<compile_context>
chip_gen: v5e
topology: v5e:2x2
jax: 0.10.0
libtpu: 0.0.40
codegen_flags: <defaults>
</compile_context>

<pallas_src>
import jax
import jax.numpy as jnp
from jax.experimental import pallas as pl
from jax.experimental.pallas import tpu as pltpu

HIDDEN = 100        # logical hidden width of the PyTorch module
HIDDEN_PAD = 128    # lane-aligned, zero-padded hidden width used on TPU


def _round_up(n, m):
    return ((n + m - 1) // m) * m


def _leaky_relu(v, slope=0.5):
    return jnp.where(v >= 0, v, slope * v)


def mlp_kernel(x_ref,
               w1_ref, b1_ref,
               w2_ref, b2_ref,
               w3_ref, b3_ref,
               w4_ref, b4_ref,
               w5_ref, b5_ref,
               o_ref):
    """One batch tile of the 5-layer MLP in feature-major layout."""
    x = x_ref[...].astype(jnp.float32)                          # (1, TB)

    # ---- layer 1 (1 -> 128): K == 1, pure VPU outer product + bias ----
    h = _leaky_relu(w1_ref[...] * x + b1_ref[...])              # (128, TB)

    # ---- layers 2-4 (128 -> 128): lane-aligned MXU matmuls, f32 accumulate ----
    for w_ref, b_ref in ((w2_ref, b2_ref), (w3_ref, b3_ref), (w4_ref, b4_ref)):
        h = jnp.dot(w_ref[...], h.astype(w_ref.dtype),
                    preferred_element_type=jnp.float32)         # (128, TB)
        h = _leaky_relu(h + b_ref[...])

    # ---- layer 5 (128 -> 1): N == 1, VPU multiply + sublane reduce ----
    out = jnp.sum(w5_ref[...] * h, axis=0, keepdims=True)       # (1, TB) lane-dense
    o_ref[...] = (out + b5_ref[...]).astype(o_ref.dtype)


def init_params(key):
    """PyTorch-layout params: weight (out_features, in_features), bias (out_features,),
    U(-1/sqrt(fan_in), 1/sqrt(fan_in)) init like nn.Linear."""
    dims = [(HIDDEN, 1), (HIDDEN, HIDDEN), (HIDDEN, HIDDEN),
            (HIDDEN, HIDDEN), (1, HIDDEN)]
    params = []
    keys = jax.random.split(key, 2 * len(dims))
    for i, (fan_out, fan_in) in enumerate(dims):
        bound = 1.0 / (fan_in ** 0.5)
        w = jax.random.uniform(keys[2 * i], (fan_out, fan_in),
                               minval=-bound, maxval=bound, dtype=jnp.float32)
        b = jax.random.uniform(keys[2 * i + 1], (fan_out,),
                               minval=-bound, maxval=bound, dtype=jnp.float32)
        params.append((w, b))
    return params


def _pad_to(a, shape):
    return jnp.pad(a, [(0, t - s) for s, t in zip(a.shape, shape)])


def prepare_params(params, dtype):
    """Zero-pad HIDDEN -> HIDDEN_PAD and lay params out for the kernel.

    Padded weight rows/cols and padded bias entries are exactly zero so the
    padded features stay at zero through the whole LeakyReLU chain."""
    (w1, b1), (w2, b2), (w3, b3), (w4, b4), (w5, b5) = params
    k = []
    # layer 1: (100,1) weight column + (128,1) bias column (VPU path, keep f32)
    k += [_pad_to(w1, (HIDDEN_PAD, 1)).astype(jnp.float32),
          _pad_to(b1.reshape(HIDDEN, 1), (HIDDEN_PAD, 1)).astype(jnp.float32)]
    # layers 2-4: PyTorch (out,in) layout is exactly W for h_next = W @ h
    for w, b in ((w2, b2), (w3, b3), (w4, b4)):
        k += [_pad_to(w, (HIDDEN_PAD, HIDDEN_PAD)).astype(dtype),
              _pad_to(b.reshape(HIDDEN, 1), (HIDDEN_PAD, 1)).astype(jnp.float32)]
    # layer 5: (1,100) stored as a (128,1) column (w5.T); scalar bias as (1,1)
    k += [_pad_to(w5.T, (HIDDEN_PAD, 1)).astype(jnp.float32),
          b5.reshape(1, 1).astype(jnp.float32)]
    return k


def nn_forward(x, params, *, batch_tile=512, dtype=jnp.float32):
    """x: (batch, 1) -> (batch, 1) float32.

    `dtype` controls the MXU operand dtype (use jnp.bfloat16 on v6e/v7x for
    higher matmul throughput at large batch; accumulation stays f32)."""
    assert batch_tile % 128 == 0
    batch = x.shape[0]
    kparams = prepare_params(params, dtype)

    # Batch goes along lanes: lane-dense input and output tiles, padded so
    # every grid step sees a full, 128-aligned tile.
    tb = min(batch_tile, _round_up(batch, 128))
    padded = _round_up(batch, tb)
    x_lanes = jnp.zeros((1, padded), dtype=jnp.float32)
    x_lanes = x_lanes.at[0, :batch].set(x.reshape(batch).astype(jnp.float32))

    grid = (padded // tb,)
    # Weights/biases: constant block index -> DMA'd once, VMEM-resident across
    # all batch tiles; only x and the output stream through the pipeline.
    const_spec = lambda a: pl.BlockSpec(a.shape, lambda i: (0, 0))
    in_specs = ([pl.BlockSpec((1, tb), lambda i: (0, i))] +
                [const_spec(a) for a in kparams])

    out = pl.pallas_call(
        mlp_kernel,
        out_shape=jax.ShapeDtypeStruct((1, padded), jnp.float32),
        grid=grid,
        in_specs=in_specs,
        out_specs=pl.BlockSpec((1, tb), lambda i: (0, i)),
        compiler_params=pltpu.CompilerParams(
            dimension_semantics=("parallel",)),  # shard batch tiles across TCs (v7x)
    )(x_lanes, *kparams)

    return out[0, :batch].reshape(batch, 1)


def nn_forward_ref(x, params):
    """Pure-JAX reference (PyTorch semantics) for sanity checking."""
    h = x
    for i, (w, b) in enumerate(params):
        h = h @ w.T + b
        if i < len(params) - 1:
            h = _leaky_relu(h)
    return h


if __name__ == "__main__":
    key = jax.random.PRNGKey(0)
    k_params, k_x = jax.random.split(key)

    params = init_params(k_params)
    x = jax.random.normal(k_x, (8, 1), dtype=jnp.float32)   # batch=8, feature=1

    y = nn_forward(x, params)
    y = jax.block_until_ready(y)

    y_ref = nn_forward_ref(x, params)
    assert y.shape == (8, 1)
    assert jnp.allclose(y, y_ref, atol=1e-4, rtol=1e-4), \
        float(jnp.max(jnp.abs(y - y_ref)))

    print("KERNEL_OK")
</pallas_src>

<mosaic_0001>
module attributes {stable_mosaic.version = 11 : i64} {
  func.func @mlp_kernel(%arg0: i32, %arg1: memref<1x128xf32, #tpu.memory_space<vmem>>, %arg2: memref<128x1xf32, #tpu.memory_space<vmem>>, %arg3: memref<128x1xf32, #tpu.memory_space<vmem>>, %arg4: memref<128x128xf32, #tpu.memory_space<vmem>>, %arg5: memref<128x1xf32, #tpu.memory_space<vmem>>, %arg6: memref<128x128xf32, #tpu.memory_space<vmem>>, %arg7: memref<128x1xf32, #tpu.memory_space<vmem>>, %arg8: memref<128x128xf32, #tpu.memory_space<vmem>>, %arg9: memref<128x1xf32, #tpu.memory_space<vmem>>, %arg10: memref<128x1xf32, #tpu.memory_space<vmem>>, %arg11: memref<1x1xf32, #tpu.memory_space<vmem>>, %arg12: memref<1x128xf32, #tpu.memory_space<vmem>>) attributes {dimension_semantics = [#tpu.dimension_semantics<parallel>], iteration_bounds = array<i64: 1>, scalar_prefetch = 0 : i64, scratch_operands = 0 : i64, tpu.core_type = #tpu.core_type<tc>, window_params = [{transform_indices = @transform_0, window_bounds = array<i64: 1, 128>}, {pipeline_mode = #tpu.pipeline_mode<synchronous>, transform_indices = @transform_1, window_bounds = array<i64: 128, 1>}, {pipeline_mode = #tpu.pipeline_mode<synchronous>, transform_indices = @transform_2, window_bounds = array<i64: 128, 1>}, {pipeline_mode = #tpu.pipeline_mode<synchronous>, transform_indices = @transform_3, window_bounds = array<i64: 128, 128>}, {pipeline_mode = #tpu.pipeline_mode<synchronous>, transform_indices = @transform_4, window_bounds = array<i64: 128, 1>}, {pipeline_mode = #tpu.pipeline_mode<synchronous>, transform_indices = @transform_5, window_bounds = array<i64: 128, 128>}, {pipeline_mode = #tpu.pipeline_mode<synchronous>, transform_indices = @transform_6, window_bounds = array<i64: 128, 1>}, {pipeline_mode = #tpu.pipeline_mode<synchronous>, transform_indices = @transform_7, window_bounds = array<i64: 128, 128>}, {pipeline_mode = #tpu.pipeline_mode<synchronous>, transform_indices = @transform_8, window_bounds = array<i64: 128, 1>}, {pipeline_mode = #tpu.pipeline_mode<synchronous>, transform_indices = @transform_9, window_bounds = array<i64: 128, 1>}, {pipeline_mode = #tpu.pipeline_mode<synchronous>, transform_indices = @transform_10, window_bounds = array<i64: 1, 1>}, {transform_indices = @transform_11, window_bounds = array<i64: 1, 128>}]} {
    %c0 = arith.constant 0 : index
    %c0_0 = arith.constant 0 : index
    %0 = vector.load %arg1[%c0, %c0_0] : memref<1x128xf32, #tpu.memory_space<vmem>>, vector<1x128xf32>
    %c0_1 = arith.constant 0 : index
    %c0_2 = arith.constant 0 : index
    %1 = vector.load %arg2[%c0_1, %c0_2] : memref<128x1xf32, #tpu.memory_space<vmem>>, vector<128x1xf32>
    %2 = vector.broadcast %1 : vector<128x1xf32> to vector<128x128xf32>
    %3 = vector.broadcast %0 : vector<1x128xf32> to vector<128x128xf32>
    %4 = arith.mulf %2, %3 : vector<128x128xf32>
    %c0_3 = arith.constant 0 : index
    %c0_4 = arith.constant 0 : index
    %5 = vector.load %arg3[%c0_3, %c0_4] : memref<128x1xf32, #tpu.memory_space<vmem>>, vector<128x1xf32>
    %6 = vector.broadcast %5 : vector<128x1xf32> to vector<128x128xf32>
    %7 = arith.addf %4, %6 : vector<128x128xf32>
    %cst = arith.constant 0.000000e+00 : f32
    %8 = vector.broadcast %cst : f32 to vector<128x128xf32>
    %9 = arith.cmpf oge, %7, %8 : vector<128x128xf32>
    %cst_5 = arith.constant 5.000000e-01 : f32
    %10 = vector.broadcast %cst_5 : f32 to vector<128x128xf32>
    %11 = arith.mulf %10, %7 : vector<128x128xf32>
    %12 = arith.select %9, %7, %11 : vector<128x128xi1>, vector<128x128xf32>
    %c0_6 = arith.constant 0 : index
    %c0_7 = arith.constant 0 : index
    %13 = vector.load %arg4[%c0_6, %c0_7] : memref<128x128xf32, #tpu.memory_space<vmem>>, vector<128x128xf32>
    %cst_8 = arith.constant dense<0.000000e+00> : vector<128x128xf32>
    %14 = tpu.matmul %13, %12, %cst_8 {dimension_numbers = #tpu.dot_dimension_numbers<[1], [0], [0], [1], [0, 0, 1, 1], [], []>} : vector<128x128xf32>, vector<128x128xf32>, vector<128x128xf32> -> vector<128x128xf32>
    %c0_9 = arith.constant 0 : index
    %c0_10 = arith.constant 0 : index
    %15 = vector.load %arg5[%c0_9, %c0_10] : memref<128x1xf32, #tpu.memory_space<vmem>>, vector<128x1xf32>
    %16 = vector.broadcast %15 : vector<128x1xf32> to vector<128x128xf32>
    %17 = arith.addf %14, %16 : vector<128x128xf32>
    %cst_11 = arith.constant 0.000000e+00 : f32
    %18 = vector.broadcast %cst_11 : f32 to vector<128x128xf32>
    %19 = arith.cmpf oge, %17, %18 : vector<128x128xf32>
    %cst_12 = arith.constant 5.000000e-01 : f32
    %20 = vector.broadcast %cst_12 : f32 to vector<128x128xf32>
    %21 = arith.mulf %20, %17 : vector<128x128xf32>
    %22 = arith.select %19, %17, %21 : vector<128x128xi1>, vector<128x128xf32>
    %c0_13 = arith.constant 0 : index
    %c0_14 = arith.constant 0 : index
    %23 = vector.load %arg6[%c0_13, %c0_14] : memref<128x128xf32, #tpu.memory_space<vmem>>, vector<128x128xf32>
    %cst_15 = arith.constant dense<0.000000e+00> : vector<128x128xf32>
    %24 = tpu.matmul %23, %22, %cst_15 {dimension_numbers = #tpu.dot_dimension_numbers<[1], [0], [0], [1], [0, 0, 1, 1], [], []>} : vector<128x128xf32>, vector<128x128xf32>, vector<128x128xf32> -> vector<128x128xf32>
    %c0_16 = arith.constant 0 : index
    %c0_17 = arith.constant 0 : index
    %25 = vector.load %arg7[%c0_16, %c0_17] : memref<128x1xf32, #tpu.memory_space<vmem>>, vector<128x1xf32>
    %26 = vector.broadcast %25 : vector<128x1xf32> to vector<128x128xf32>
    %27 = arith.addf %24, %26 : vector<128x128xf32>
    %cst_18 = arith.constant 0.000000e+00 : f32
    %28 = vector.broadcast %cst_18 : f32 to vector<128x128xf32>
    %29 = arith.cmpf oge, %27, %28 : vector<128x128xf32>
    %cst_19 = arith.constant 5.000000e-01 : f32
    %30 = vector.broadcast %cst_19 : f32 to vector<128x128xf32>
    %31 = arith.mulf %30, %27 : vector<128x128xf32>
    %32 = arith.select %29, %27, %31 : vector<128x128xi1>, vector<128x128xf32>
    %c0_20 = arith.constant 0 : index
    %c0_21 = arith.constant 0 : index
    %33 = vector.load %arg8[%c0_20, %c0_21] : memref<128x128xf32, #tpu.memory_space<vmem>>, vector<128x128xf32>
    %cst_22 = arith.constant dense<0.000000e+00> : vector<128x128xf32>
    %34 = tpu.matmul %33, %32, %cst_22 {dimension_numbers = #tpu.dot_dimension_numbers<[1], [0], [0], [1], [0, 0, 1, 1], [], []>} : vector<128x128xf32>, vector<128x128xf32>, vector<128x128xf32> -> vector<128x128xf32>
    %c0_23 = arith.constant 0 : index
    %c0_24 = arith.constant 0 : index
    %35 = vector.load %arg9[%c0_23, %c0_24] : memref<128x1xf32, #tpu.memory_space<vmem>>, vector<128x1xf32>
    %36 = vector.broadcast %35 : vector<128x1xf32> to vector<128x128xf32>
    %37 = arith.addf %34, %36 : vector<128x128xf32>
    %cst_25 = arith.constant 0.000000e+00 : f32
    %38 = vector.broadcast %cst_25 : f32 to vector<128x128xf32>
    %39 = arith.cmpf oge, %37, %38 : vector<128x128xf32>
    %cst_26 = arith.constant 5.000000e-01 : f32
    %40 = vector.broadcast %cst_26 : f32 to vector<128x128xf32>
    %41 = arith.mulf %40, %37 : vector<128x128xf32>
    %42 = arith.select %39, %37, %41 : vector<128x128xi1>, vector<128x128xf32>
    %c0_27 = arith.constant 0 : index
    %c0_28 = arith.constant 0 : index
    %43 = vector.load %arg10[%c0_27, %c0_28] : memref<128x1xf32, #tpu.memory_space<vmem>>, vector<128x1xf32>
    %44 = vector.broadcast %43 : vector<128x1xf32> to vector<128x128xf32>
    %45 = arith.mulf %44, %42 : vector<128x128xf32>
    %cst_29 = arith.constant dense<0.000000e+00> : vector<128xf32>
    %46 = vector.multi_reduction <add>, %45, %cst_29 [0] : vector<128x128xf32> to vector<128xf32>
    %47 = vector.shape_cast %46 : vector<128xf32> to vector<1x128xf32>
    %c0_30 = arith.constant 0 : index
    %c0_31 = arith.constant 0 : index
    %48 = vector.load %arg11[%c0_30, %c0_31] : memref<1x1xf32, #tpu.memory_space<vmem>>, vector<1x1xf32>
    %49 = vector.broadcast %48 : vector<1x1xf32> to vector<1x128xf32>
    %50 = arith.addf %47, %49 : vector<1x128xf32>
    %c0_32 = arith.constant 0 : index
    %c0_33 = arith.constant 0 : index
    %51 = vector.load %arg12[%c0_32, %c0_33] : memref<1x128xf32, #tpu.memory_space<vmem>>, vector<1x128xf32>
    tpu.vector_store %arg12[%c0_32, %c0_33], %50 {strides = array<i32>} : memref<1x128xf32, #tpu.memory_space<vmem>>, vector<1x128xf32>,
    return
  }
  func.func @transform_0(%arg0: i32) -> (i32, i32) {
    %c0_i32 = arith.constant 0 : i32
    %c0_i32_0 = arith.constant 0 : i32
    return %c0_i32, %arg0 : i32, i32
  }
  func.func @transform_1(%arg0: i32) -> (i32, i32) {
    %c0_i32 = arith.constant 0 : i32
    %c0_i32_0 = arith.constant 0 : i32
    %c0_i32_1 = arith.constant 0 : i32
    return %c0_i32, %c0_i32_0 : i32, i32
  }
  func.func @transform_2(%arg0: i32) -> (i32, i32) {
    %c0_i32 = arith.constant 0 : i32
    %c0_i32_0 = arith.constant 0 : i32
    %c0_i32_1 = arith.constant 0 : i32
    return %c0_i32, %c0_i32_0 : i32, i32
  }
  func.func @transform_3(%arg0: i32) -> (i32, i32) {
    %c0_i32 = arith.constant 0 : i32
    %c0_i32_0 = arith.constant 0 : i32
    %c0_i32_1 = arith.constant 0 : i32
    return %c0_i32, %c0_i32_0 : i32, i32
  }
  func.func @transform_4(%arg0: i32) -> (i32, i32) {
    %c0_i32 = arith.constant 0 : i32
    %c0_i32_0 = arith.constant 0 : i32
    %c0_i32_1 = arith.constant 0 : i32
    return %c0_i32, %c0_i32_0 : i32, i32
  }
  func.func @transform_5(%arg0: i32) -> (i32, i32) {
    %c0_i32 = arith.constant 0 : i32
    %c0_i32_0 = arith.constant 0 : i32
    %c0_i32_1 = arith.constant 0 : i32
    return %c0_i32, %c0_i32_0 : i32, i32
  }
  func.func @transform_6(%arg0: i32) -> (i32, i32) {
    %c0_i32 = arith.constant 0 : i32
    %c0_i32_0 = arith.constant 0 : i32
    %c0_i32_1 = arith.constant 0 : i32
    return %c0_i32, %c0_i32_0 : i32, i32
  }
  func.func @transform_7(%arg0: i32) -> (i32, i32) {
    %c0_i32 = arith.constant 0 : i32
    %c0_i32_0 = arith.constant 0 : i32
    %c0_i32_1 = arith.constant 0 : i32
    return %c0_i32, %c0_i32_0 : i32, i32
  }
  func.func @transform_8(%arg0: i32) -> (i32, i32) {
    %c0_i32 = arith.constant 0 : i32
    %c0_i32_0 = arith.constant 0 : i32
    %c0_i32_1 = arith.constant 0 : i32
    return %c0_i32, %c0_i32_0 : i32, i32
  }
  func.func @transform_9(%arg0: i32) -> (i32, i32) {
    %c0_i32 = arith.constant 0 : i32
    %c0_i32_0 = arith.constant 0 : i32
    %c0_i32_1 = arith.constant 0 : i32
    return %c0_i32, %c0_i32_0 : i32, i32
  }
  func.func @transform_10(%arg0: i32) -> (i32, i32) {
    %c0_i32 = arith.constant 0 : i32
    %c0_i32_0 = arith.constant 0 : i32
    %c0_i32_1 = arith.constant 0 : i32
    return %c0_i32, %c0_i32_0 : i32, i32
  }
  func.func @transform_11(%arg0: i32) -> (i32, i32) {
    %c0_i32 = arith.constant 0 : i32
    %c0_i32_0 = arith.constant 0 : i32
    return %c0_i32, %arg0 : i32, i32
  }
}

</mosaic_0001>

<llo_original>
// kernel: tpu_custom_call.1
$region0: #{tpu_custom_call.1}
  #allocation0 [shape = 'u32[]', space=smem, size = 0x4, offset = 0x4, fixed_abs, tag = 'smem constant byte address 0x4 - core index']
  #allocation1 [shape = 'u32[72,128]{1,0:T(1,128)}', space=vmem, size = 0x9000, scoped, tag = 'internal scratch']
  #allocation2 [shape = 'f32[1,1]{1,0:T(1,128)S(1)}', space=vmem, size = 0x200, scoped, tag = 'scoped memory for tpu_custom_call.1']
  %s0 = inlined_call_operand.vmem [shape: f32[1,128], index: 0, kind: input, shape index: {}]
  %s1 = inlined_call_operand.vmem [shape: f32[128,1], index: 1, kind: input, shape index: {}]
  %s2 = inlined_call_operand.vmem [shape: f32[128,1], index: 2, kind: input, shape index: {}]
  %s3 = inlined_call_operand.vmem [shape: f32[128,128], index: 3, kind: input, shape index: {}]
  %s4 = inlined_call_operand.vmem [shape: f32[128,1], index: 4, kind: input, shape index: {}]
  %s5 = inlined_call_operand.vmem [shape: f32[128,128], index: 5, kind: input, shape index: {}]
  %s6 = inlined_call_operand.vmem [shape: f32[128,1], index: 6, kind: input, shape index: {}]
  %s7 = inlined_call_operand.vmem [shape: f32[128,128], index: 7, kind: input, shape index: {}]
  %s8 = inlined_call_operand.vmem [shape: f32[128,1], index: 8, kind: input, shape index: {}]
  %s9 = inlined_call_operand.vmem [shape: f32[128,1], index: 9, kind: input, shape index: {}]
  %s10 = inlined_call_operand.<no memory space> [shape: f32[1,1], index: 10, kind: input, shape index: {}]
  %s11 = inlined_call_operand.hbm [shape: f32[1,128], index: 11, kind: output, shape index: {}]
  %s12 = sld [smem:[#allocation0]]
  $region54: #{tpu_custom_call.1} parent=0
    _
  %s14 = ssub.s32 1, %s12
  %s15 = scalar_select 0, %s14, %s12
  %v16 = vstv %s10
  %17 = vst [vmem:[#allocation2] sm:$0x1] %v16
  $region1: #{tpu_custom_call.1} parent=0
    #allocation3 [shape = 'u8[512]{0}', space=vmem, size = 0x400, scoped, tag = 'output window, operand 0, single buffered']
    #allocation4 [shape = 's32[1]{0}', space=sflag, size = 0x4, scoped, tag = 'scoped memory for tpu_custom_call.1']
    %18 = vsyncpa [#allocation4], 0
    // Predicated region
    $region2: #{tpu_custom_call.1} parent=1 // pred_check
      _
    $region3: #{tpu_custom_call.1} parent=1 // pred_check_branch
      %20 = sbr.rel (0) target = $region5
    $region4: #{tpu_custom_call.1} parent=1 // pred_region
      _
    $region5: #{tpu_custom_call.1} parent=1 // pred_fallthru
      _
    // Predicated region
    $region6: #{tpu_custom_call.1} parent=1 // pred_check
      _
    $region7: #{tpu_custom_call.1} parent=1 // pred_check_branch
      %22 = sbr.rel (0) target = $region9
    $region8: #{tpu_custom_call.1} parent=1 // pred_region
      _
    $region9: #{tpu_custom_call.1} parent=1 // pred_fallthru
      _
    // Predicated region
    $region10: #{tpu_custom_call.1} parent=1 // pred_check
      _
    $region11: #{tpu_custom_call.1} parent=1 // pred_check_branch
      %24 = sbr.rel (0) target = $region13
    $region12: #{tpu_custom_call.1} parent=1 // pred_region
      _
    $region13: #{tpu_custom_call.1} parent=1 // pred_fallthru
      _
    // Predicated region
    $region14: #{tpu_custom_call.1} parent=1 // pred_check
      _
    $region15: #{tpu_custom_call.1} parent=1 // pred_check_branch
      %26 = sbr.rel (0) target = $region17
    $region16: #{tpu_custom_call.1} parent=1 // pred_region
      _
    $region17: #{tpu_custom_call.1} parent=1 // pred_fallthru
      _
    // Predicated region
    $region18: #{tpu_custom_call.1} parent=1 // pred_check
      _
    $region19: #{tpu_custom_call.1} parent=1 // pred_check_branch
      %28 = sbr.rel (0) target = $region21
    $region20: #{tpu_custom_call.1} parent=1 // pred_region
      _
    $region21: #{tpu_custom_call.1} parent=1 // pred_fallthru
      _
    // Predicated region
    $region22: #{tpu_custom_call.1} parent=1 // pred_check
      _
    $region23: #{tpu_custom_call.1} parent=1 // pred_check_branch
      %30 = sbr.rel (0) target = $region25
    $region24: #{tpu_custom_call.1} parent=1 // pred_region
      _
    $region25: #{tpu_custom_call.1} parent=1 // pred_fallthru
      _
    // Predicated region
    $region26: #{tpu_custom_call.1} parent=1 // pred_check
      _
    $region27: #{tpu_custom_call.1} parent=1 // pred_check_branch
      %32 = sbr.rel (0) target = $region29
    $region28: #{tpu_custom_call.1} parent=1 // pred_region
      _
    $region29: #{tpu_custom_call.1} parent=1 // pred_fallthru
      _
    // Predicated region
    $region30: #{tpu_custom_call.1} parent=1 // pred_check
      _
    $region31: #{tpu_custom_call.1} parent=1 // pred_check_branch
      %34 = sbr.rel (0) target = $region33
    $region32: #{tpu_custom_call.1} parent=1 // pred_region
      _
    $region33: #{tpu_custom_call.1} parent=1 // pred_fallthru
      _
    // Predicated region
    $region34: #{tpu_custom_call.1} parent=1 // pred_check
      _
    $region35: #{tpu_custom_call.1} parent=1 // pred_check_branch
      %36 = sbr.rel (0) target = $region37
    $region36: #{tpu_custom_call.1} parent=1 // pred_region
      _
    $region37: #{tpu_custom_call.1} parent=1 // pred_fallthru
      _
    // Predicated region
    $region38: #{tpu_custom_call.1} parent=1 // pred_check
      _
    $region39: #{tpu_custom_call.1} parent=1 // pred_check_branch
      %38 = sbr.rel (0) target = $region41
    $region40: #{tpu_custom_call.1} parent=1 // pred_region
      _
    $region41: #{tpu_custom_call.1} parent=1 // pred_fallthru
      _
    // Predicated region
    $region42: #{tpu_custom_call.1} parent=1 // pred_check
      _
    $region43: #{tpu_custom_call.1} parent=1 // pred_check_branch
      %40 = sbr.rel (0) target = $region45
    $region44: #{tpu_custom_call.1} parent=1 // pred_region
      _
    $region45: #{tpu_custom_call.1} parent=1 // pred_fallthru
      _
    %v41 = vld [vmem:[%s0] sm:$0x1]
    %v42 = vld [vmem:[%s1] sm:$0xff]
    %v43 = vld [vmem:[%s1 + $0x8] sm:$0xff]
    %v44 = vld [vmem:[%s1 + $0x10] sm:$0xff]
    %v45 = vld [vmem:[%s1 + $0x18] sm:$0xff]
    %v46 = vld [vmem:[%s1 + $0x20] sm:$0xff]
    %v47 = vld [vmem:[%s1 + $0x28] sm:$0xff]
    %v48 = vld [vmem:[%s1 + $0x30] sm:$0xff]
    %v49 = vld [vmem:[%s1 + $0x38] sm:$0xff]
    %v50 = vld [vmem:[%s1 + $0x40] sm:$0xff]
    %v51 = vld [vmem:[%s1 + $0x48] sm:$0xff]
    %v52 = vld [vmem:[%s1 + $0x50] sm:$0xff]
    %v53 = vld [vmem:[%s1 + $0x58] sm:$0xff]
    %v54 = vld [vmem:[%s1 + $0x60] sm:$0xff]
    %v55 = vld [vmem:[%s1 + $0x68] sm:$0xff]
    %v56 = vld [vmem:[%s1 + $0x70] sm:$0xff]
    %v57 = vld [vmem:[%s1 + $0x78] sm:$0xff]
    %59 = vset.pattern.permute.xlu0 0
    %60 = vperm.xlu0 %59, %v42
    %v61 = vpop.permute.xlu0 %60
    %64 = vset.pattern.permute.xlu0 0
    %65 = vperm.xlu0 %64, %v43
    %v66 = vpop.permute.xlu0 %65
    %69 = vset.pattern.permute.xlu0 0
    %70 = vperm.xlu0 %69, %v44
    %v71 = vpop.permute.xlu0 %70
    %74 = vset.pattern.permute.xlu0 0
    %75 = vperm.xlu0 %74, %v45
    %v76 = vpop.permute.xlu0 %75
    %79 = vset.pattern.permute.xlu0 0
    %80 = vperm.xlu0 %79, %v46
    %v81 = vpop.permute.xlu0 %80
    %84 = vset.pattern.permute.xlu0 0
    %85 = vperm.xlu0 %84, %v47
    %v86 = vpop.permute.xlu0 %85
    %89 = vset.pattern.permute.xlu0 0
    %90 = vperm.xlu0 %89, %v48
    %v91 = vpop.permute.xlu0 %90
    %94 = vset.pattern.permute.xlu0 0
    %95 = vperm.xlu0 %94, %v49
    %v96 = vpop.permute.xlu0 %95
    %99 = vset.pattern.permute.xlu0 0
    %100 = vperm.xlu0 %99, %v50
    %v101 = vpop.permute.xlu0 %100
    %104 = vset.pattern.permute.xlu0 0
    %105 = vperm.xlu0 %104, %v51
    %v106 = vpop.permute.xlu0 %105
    %109 = vset.pattern.permute.xlu0 0
    %110 = vperm.xlu0 %109, %v52
    %v111 = vpop.permute.xlu0 %110
    %114 = vset.pattern.permute.xlu0 0
    %115 = vperm.xlu0 %114, %v53
    %v116 = vpop.permute.xlu0 %115
    %119 = vset.pattern.permute.xlu0 0
    %120 = vperm.xlu0 %119, %v54
    %v121 = vpop.permute.xlu0 %120
    %124 = vset.pattern.permute.xlu0 0
    %125 = vperm.xlu0 %124, %v55
    %v126 = vpop.permute.xlu0 %125
    %129 = vset.pattern.permute.xlu0 0
    %130 = vperm.xlu0 %129, %v56
    %v131 = vpop.permute.xlu0 %130
    %134 = vset.pattern.permute.xlu0 0
    %135 = vperm.xlu0 %134, %v57
    %v136 = vpop.permute.xlu0 %135
    %v139 = vperm.slane %v41, 0
    %v141 = vmul.f32 %v61, %v139
    %v142 = vmul.f32 %v66, %v139
    %v143 = vmul.f32 %v71, %v139
    %v144 = vmul.f32 %v76, %v139
    %v145 = vmul.f32 %v81, %v139
    %v146 = vmul.f32 %v86, %v139
    %v147 = vmul.f32 %v91, %v139
    %v148 = vmul.f32 %v96, %v139
    %v149 = vmul.f32 %v101, %v139
    %v150 = vmul.f32 %v106, %v139
    %v151 = vmul.f32 %v111, %v139
    %v152 = vmul.f32 %v116, %v139
    %v153 = vmul.f32 %v121, %v139
    %v154 = vmul.f32 %v126, %v139
    %v155 = vmul.f32 %v131, %v139
    %v156 = vmul.f32 %v136, %v139
    %v157 = vld [vmem:[%s2] sm:$0xff]
    %v158 = vld [vmem:[%s2 + $0x8] sm:$0xff]
    %v159 = vld [vmem:[%s2 + $0x10] sm:$0xff]
    %v160 = vld [vmem:[%s2 + $0x18] sm:$0xff]
    %v161 = vld [vmem:[%s2 + $0x20] sm:$0xff]
    %v162 = vld [vmem:[%s2 + $0x28] sm:$0xff]
    %v163 = vld [vmem:[%s2 + $0x30] sm:$0xff]
    %v164 = vld [vmem:[%s2 + $0x38] sm:$0xff]
    %v165 = vld [vmem:[%s2 + $0x40] sm:$0xff]
    %v166 = vld [vmem:[%s2 + $0x48] sm:$0xff]
    %v167 = vld [vmem:[%s2 + $0x50] sm:$0xff]
    %v168 = vld [vmem:[%s2 + $0x58] sm:$0xff]
    %v169 = vld [vmem:[%s2 + $0x60] sm:$0xff]
    %v170 = vld [vmem:[%s2 + $0x68] sm:$0xff]
    %v171 = vld [vmem:[%s2 + $0x70] sm:$0xff]
    %v172 = vld [vmem:[%s2 + $0x78] sm:$0xff]
    %174 = vset.pattern.permute.xlu0 0
    %175 = vperm.xlu0 %174, %v157
    %v176 = vpop.permute.xlu0 %175
    %179 = vset.pattern.permute.xlu0 0
    %180 = vperm.xlu0 %179, %v158
    %v181 = vpop.permute.xlu0 %180
    %184 = vset.pattern.permute.xlu0 0
    %185 = vperm.xlu0 %184, %v159
    %v186 = vpop.permute.xlu0 %185
    %189 = vset.pattern.permute.xlu0 0
    %190 = vperm.xlu0 %189, %v160
    %v191 = vpop.permute.xlu0 %190
    %194 = vset.pattern.permute.xlu0 0
    %195 = vperm.xlu0 %194, %v161
    %v196 = vpop.permute.xlu0 %195
    %199 = vset.pattern.permute.xlu0 0
    %200 = vperm.xlu0 %199, %v162
    %v201 = vpop.permute.xlu0 %200
    %204 = vset.pattern.permute.xlu0 0
    %205 = vperm.xlu0 %204, %v163
    %v206 = vpop.permute.xlu0 %205
    %209 = vset.pattern.permute.xlu0 0
    %210 = vperm.xlu0 %209, %v164
    %v211 = vpop.permute.xlu0 %210
    %214 = vset.pattern.permute.xlu0 0
    %215 = vperm.xlu0 %214, %v165
    %v216 = vpop.permute.xlu0 %215
    %219 = vset.pattern.permute.xlu0 0
    %220 = vperm.xlu0 %219, %v166
    %v221 = vpop.permute.xlu0 %220
    %224 = vset.pattern.permute.xlu0 0
    %225 = vperm.xlu0 %224, %v167
    %v226 = vpop.permute.xlu0 %225
    %229 = vset.pattern.permute.xlu0 0
    %230 = vperm.xlu0 %229, %v168
    %v231 = vpop.permute.xlu0 %230
    %234 = vset.pattern.permute.xlu0 0
    %235 = vperm.xlu0 %234, %v169
    %v236 = vpop.permute.xlu0 %235
    %239 = vset.pattern.permute.xlu0 0
    %240 = vperm.xlu0 %239, %v170
    %v241 = vpop.permute.xlu0 %240
    %244 = vset.pattern.permute.xlu0 0
    %245 = vperm.xlu0 %244, %v171
    %v246 = vpop.permute.xlu0 %245
    %249 = vset.pattern.permute.xlu0 0
    %250 = vperm.xlu0 %249, %v172
    %v251 = vpop.permute.xlu0 %250
    %v253 = vadd.f32 %v141, %v176
    %v254 = vadd.f32 %v142, %v181
    %v255 = vadd.f32 %v143, %v186
    %v256 = vadd.f32 %v144, %v191
    %v257 = vadd.f32 %v145, %v196
    %v258 = vadd.f32 %v146, %v201
    %v259 = vadd.f32 %v147, %v206
    %v260 = vadd.f32 %v148, %v211
    %v261 = vadd.f32 %v149, %v216
    %v262 = vadd.f32 %v150, %v221
    %v263 = vadd.f32 %v151, %v226
    %v264 = vadd.f32 %v152, %v231
    %v265 = vadd.f32 %v153, %v236
    %v266 = vadd.f32 %v154, %v241
    %v267 = vadd.f32 %v155, %v246
    %v268 = vadd.f32 %v156, %v251
    %vm269 = vcmp.ge.f32.partialorder %v253, 0.0
    %vm270 = vcmp.ge.f32.partialorder %v254, 0.0
    %vm271 = vcmp.ge.f32.partialorder %v255, 0.0
    %vm272 = vcmp.ge.f32.partialorder %v256, 0.0
    %vm273 = vcmp.ge.f32.partialorder %v257, 0.0
    %vm274 = vcmp.ge.f32.partialorder %v258, 0.0
    %vm275 = vcmp.ge.f32.partialorder %v259, 0.0
    %vm276 = vcmp.ge.f32.partialorder %v260, 0.0
    %vm277 = vcmp.ge.f32.partialorder %v261, 0.0
    %vm278 = vcmp.ge.f32.partialorder %v262, 0.0
    %vm279 = vcmp.ge.f32.partialorder %v263, 0.0
    %vm280 = vcmp.ge.f32.partialorder %v264, 0.0
    %vm281 = vcmp.ge.f32.partialorder %v265, 0.0
    %vm282 = vcmp.ge.f32.partialorder %v266, 0.0
    %vm283 = vcmp.ge.f32.partialorder %v267, 0.0
    %vm284 = vcmp.ge.f32.partialorder %v268, 0.0
    %v285 = vmul.f32 %v253, 0.5
    %v286 = vmul.f32 %v254, 0.5
    %v287 = vmul.f32 %v255, 0.5
    %v288 = vmul.f32 %v256, 0.5
    %v289 = vmul.f32 %v257, 0.5
    %v290 = vmul.f32 %v258, 0.5
    %v291 = vmul.f32 %v259, 0.5
    %v292 = vmul.f32 %v260, 0.5
    %v293 = vmul.f32 %v261, 0.5
    %v294 = vmul.f32 %v262, 0.5
    %v295 = vmul.f32 %v263, 0.5
    %v296 = vmul.f32 %v264, 0.5
    %v297 = vmul.f32 %v265, 0.5
    %v298 = vmul.f32 %v266, 0.5
    %v299 = vmul.f32 %v267, 0.5
    %v300 = vmul.f32 %v268, 0.5
    %v301 = vsel %vm269, %v253, %v285
    %v302 = vsel %vm270, %v254, %v286
    %v303 = vsel %vm271, %v255, %v287
    %v304 = vsel %vm272, %v256, %v288
    %v305 = vsel %vm273, %v257, %v289
    %v306 = vsel %vm274, %v258, %v290
    %v307 = vsel %vm275, %v259, %v291
    %v308 = vsel %vm276, %v260, %v292
    %v309 = vsel %vm277, %v261, %v293
    %v310 = vsel %vm278, %v262, %v294
    %v311 = vsel %vm279, %v263, %v295
    %v312 = vsel %vm280, %v264, %v296
    %v313 = vsel %vm281, %v265, %v297
    %v314 = vsel %vm282, %v266, %v298
    %v315 = vsel %vm283, %v267, %v299
    %v316 = vsel %vm284, %v268, %v300
    %v317 = vld [vmem:[%s3] sm:$0xff]
    %v318 = vld [vmem:[%s3 + $0x8] sm:$0xff]
    %v319 = vld [vmem:[%s3 + $0x10] sm:$0xff]
    %v320 = vld [vmem:[%s3 + $0x18] sm:$0xff]
    %v321 = vld [vmem:[%s3 + $0x20] sm:$0xff]
    %v322 = vld [vmem:[%s3 + $0x28] sm:$0xff]
    %v323 = vld [vmem:[%s3 + $0x30] sm:$0xff]
    %v324 = vld [vmem:[%s3 + $0x38] sm:$0xff]
    %v325 = vld [vmem:[%s3 + $0x40] sm:$0xff]
    %v326 = vld [vmem:[%s3 + $0x48] sm:$0xff]
    %v327 = vld [vmem:[%s3 + $0x50] sm:$0xff]
    %v328 = vld [vmem:[%s3 + $0x58] sm:$0xff]
    %v329 = vld [vmem:[%s3 + $0x60] sm:$0xff]
    %v330 = vld [vmem:[%s3 + $0x68] sm:$0xff]
    %v331 = vld [vmem:[%s3 + $0x70] sm:$0xff]
    %v332 = vld [vmem:[%s3 + $0x78] sm:$0xff]
    %v333 = vld [vmem:[%s4] sm:$0xff]
    %v334 = vld [vmem:[%s4 + $0x8] sm:$0xff]
    %v335 = vld [vmem:[%s4 + $0x10] sm:$0xff]
    %v336 = vld [vmem:[%s4 + $0x18] sm:$0xff]
    %v337 = vld [vmem:[%s4 + $0x20] sm:$0xff]
    %v338 = vld [vmem:[%s4 + $0x28] sm:$0xff]
    %v339 = vld [vmem:[%s4 + $0x30] sm:$0xff]
    %v340 = vld [vmem:[%s4 + $0x38] sm:$0xff]
    %v341 = vld [vmem:[%s4 + $0x40] sm:$0xff]
    %v342 = vld [vmem:[%s4 + $0x48] sm:$0xff]
    %v343 = vld [vmem:[%s4 + $0x50] sm:$0xff]
    %v344 = vld [vmem:[%s4 + $0x58] sm:$0xff]
    %v345 = vld [vmem:[%s4 + $0x60] sm:$0xff]
    %v346 = vld [vmem:[%s4 + $0x68] sm:$0xff]
    %v347 = vld [vmem:[%s4 + $0x70] sm:$0xff]
    %v348 = vld [vmem:[%s4 + $0x78] sm:$0xff]
    %350 = vset.pattern.permute.xlu0 0
    %351 = vperm.xlu0 %350, %v333
    %v352 = vpop.permute.xlu0 %351
    %355 = vset.pattern.permute.xlu0 0
    %356 = vperm.xlu0 %355, %v334
    %v357 = vpop.permute.xlu0 %356
    %360 = vset.pattern.permute.xlu0 0
    %361 = vperm.xlu0 %360, %v335
    %v362 = vpop.permute.xlu0 %361
    %365 = vset.pattern.permute.xlu0 0
    %366 = vperm.xlu0 %365, %v336
    %v367 = vpop.permute.xlu0 %366
    %370 = vset.pattern.permute.xlu0 0
    %371 = vperm.xlu0 %370, %v337
    %v372 = vpop.permute.xlu0 %371
    %375 = vset.pattern.permute.xlu0 0
    %376 = vperm.xlu0 %375, %v338
    %v377 = vpop.permute.xlu0 %376
    %380 = vset.pattern.permute.xlu0 0
    %381 = vperm.xlu0 %380, %v339
    %v382 = vpop.permute.xlu0 %381
    %385 = vset.pattern.permute.xlu0 0
    %386 = vperm.xlu0 %385, %v340
    %v387 = vpop.permute.xlu0 %386
    %390 = vset.pattern.permute.xlu0 0
    %391 = vperm.xlu0 %390, %v341
    %v392 = vpop.permute.xlu0 %391
    %395 = vset.pattern.permute.xlu0 0
    %396 = vperm.xlu0 %395, %v342
    %v397 = vpop.permute.xlu0 %396
    %400 = vset.pattern.permute.xlu0 0
    %401 = vperm.xlu0 %400, %v343
    %v402 = vpop.permute.xlu0 %401
    %405 = vset.pattern.permute.xlu0 0
    %406 = vperm.xlu0 %405, %v344
    %v407 = vpop.permute.xlu0 %406
    %410 = vset.pattern.permute.xlu0 0
    %411 = vperm.xlu0 %410, %v345
    %v412 = vpop.permute.xlu0 %411
    %415 = vset.pattern.permute.xlu0 0
    %416 = vperm.xlu0 %415, %v346
    %v417 = vpop.permute.xlu0 %416
    %420 = vset.pattern.permute.xlu0 0
    %421 = vperm.xlu0 %420, %v347
    %v422 = vpop.permute.xlu0 %421
    %425 = vset.pattern.permute.xlu0 0
    %426 = vperm.xlu0 %425, %v348
    %v427 = vpop.permute.xlu0 %426
    %429 = vmatpush.msra.mxu0 %v316
    %430 = vmatpush.msra.mxu0 %v315
    %431 = vmatpush.msra.mxu0 %v314
    %432 = vmatpush.msra.mxu0 %v313
    %433 = vmatpush.msra.mxu0 %v312
    %434 = vmatpush.msra.mxu0 %v311
    %435 = vmatpush.msra.mxu0 %v310
    %436 = vmatpush.msra.mxu0 %v309
    %437 = vmatpush.msra.mxu0 %v308
    %438 = vmatpush.msra.mxu0 %v307
    %439 = vmatpush.msra.mxu0 %v306
    %440 = vmatpush.msra.mxu0 %v305
    %441 = vmatpush.msra.mxu0 %v304
    %442 = vmatpush.msra.mxu0 %v303
    %443 = vmatpush.msra.mxu0 %v302
    %444 = vmatpush.msra.mxu0 %v301
    %445 = vmatmul.f32.gmra.mxu0 %v317
    %v446 = vpop.f32.mrf.mxu0
    %v447 = vadd.f32 %v352, %v446
    %448 = vmatmul.f32.gmra.mxu0 %v318
    %v449 = vpop.f32.mrf.mxu0
    %v450 = vadd.f32 %v357, %v449
    %451 = vmatmul.f32.gmra.mxu0 %v319
    %v452 = vpop.f32.mrf.mxu0
    %v453 = vadd.f32 %v362, %v452
    %454 = vmatmul.f32.gmra.mxu0 %v320
    %v455 = vpop.f32.mrf.mxu0
    %v456 = vadd.f32 %v367, %v455
    %457 = vmatmul.f32.gmra.mxu0 %v321
    %v458 = vpop.f32.mrf.mxu0
    %v459 = vadd.f32 %v372, %v458
    %460 = vmatmul.f32.gmra.mxu0 %v322
    %v461 = vpop.f32.mrf.mxu0
    %v462 = vadd.f32 %v377, %v461
    %463 = vmatmul.f32.gmra.mxu0 %v323
    %v464 = vpop.f32.mrf.mxu0
    %v465 = vadd.f32 %v382, %v464
    %466 = vmatmul.f32.gmra.mxu0 %v324
    %v467 = vpop.f32.mrf.mxu0
    %v468 = vadd.f32 %v387, %v467
    %469 = vmatmul.f32.gmra.mxu0 %v325
    %v470 = vpop.f32.mrf.mxu0
    %v471 = vadd.f32 %v392, %v470
    %472 = vmatmul.f32.gmra.mxu0 %v326
    %v473 = vpop.f32.mrf.mxu0
    %v474 = vadd.f32 %v397, %v473
    %475 = vmatmul.f32.gmra.mxu0 %v327
    %v476 = vpop.f32.mrf.mxu0
    %v477 = vadd.f32 %v402, %v476
    %478 = vmatmul.f32.gmra.mxu0 %v328
    %v479 = vpop.f32.mrf.mxu0
    %v480 = vadd.f32 %v407, %v479
    %481 = vmatmul.f32.gmra.mxu0 %v329
    %v482 = vpop.f32.mrf.mxu0
    %v483 = vadd.f32 %v412, %v482
    %484 = vmatmul.f32.gmra.mxu0 %v330
    %v485 = vpop.f32.mrf.mxu0
    %v486 = vadd.f32 %v417, %v485
    %487 = vmatmul.f32.gmra.mxu0 %v331
    %v488 = vpop.f32.mrf.mxu0
    %v489 = vadd.f32 %v422, %v488
    %490 = vmatmul.f32.gmra.mxu0 %v332
    %v491 = vpop.f32.mrf.mxu0
    %v492 = vadd.f32 %v427, %v491
    %493 = vdwg.mxu0
    %vm494 = vcmp.ge.f32.partialorder %v447, 0.0
    %vm495 = vcmp.ge.f32.partialorder %v450, 0.0
    %vm496 = vcmp.ge.f32.partialorder %v453, 0.0
    %vm497 = vcmp.ge.f32.partialorder %v456, 0.0
    %vm498 = vcmp.ge.f32.partialorder %v459, 0.0
    %vm499 = vcmp.ge.f32.partialorder %v462, 0.0
    %vm500 = vcmp.ge.f32.partialorder %v465, 0.0
    %vm501 = vcmp.ge.f32.partialorder %v468, 0.0
    %vm502 = vcmp.ge.f32.partialorder %v471, 0.0
    %vm503 = vcmp.ge.f32.partialorder %v474, 0.0
    %vm504 = vcmp.ge.f32.partialorder %v477, 0.0
    %vm505 = vcmp.ge.f32.partialorder %v480, 0.0
    %vm506 = vcmp.ge.f32.partialorder %v483, 0.0
    %vm507 = vcmp.ge.f32.partialorder %v486, 0.0
    %vm508 = vcmp.ge.f32.partialorder %v489, 0.0
    %vm509 = vcmp.ge.f32.partialorder %v492, 0.0
    %v510 = vmul.f32 %v447, 0.5
    %v511 = vmul.f32 %v450, 0.5
    %v512 = vmul.f32 %v453, 0.5
    %v513 = vmul.f32 %v456, 0.5
    %v514 = vmul.f32 %v459, 0.5
    %v515 = vmul.f32 %v462, 0.5
    %v516 = vmul.f32 %v465, 0.5
    %v517 = vmul.f32 %v468, 0.5
    %v518 = vmul.f32 %v471, 0.5
    %v519 = vmul.f32 %v474, 0.5
    %v520 = vmul.f32 %v477, 0.5
    %v521 = vmul.f32 %v480, 0.5
    %v522 = vmul.f32 %v483, 0.5
    %v523 = vmul.f32 %v486, 0.5
    %v524 = vmul.f32 %v489, 0.5
    %v525 = vmul.f32 %v492, 0.5
    %v526 = vsel %vm494, %v447, %v510
    %v527 = vsel %vm495, %v450, %v511
    %v528 = vsel %vm496, %v453, %v512
    %v529 = vsel %vm497, %v456, %v513
    %v530 = vsel %vm498, %v459, %v514
    %v531 = vsel %vm499, %v462, %v515
    %v532 = vsel %vm500, %v465, %v516
    %v533 = vsel %vm501, %v468, %v517
    %v534 = vsel %vm502, %v471, %v518
    %v535 = vsel %vm503, %v474, %v519
    %v536 = vsel %vm504, %v477, %v520
    %v537 = vsel %vm505, %v480, %v521
    %v538 = vsel %vm506, %v483, %v522
    %v539 = vsel %vm507, %v486, %v523
    %v540 = vsel %vm508, %v489, %v524
    %v541 = vsel %vm509, %v492, %v525
    %v542 = vld [vmem:[%s5] sm:$0xff]
    %v543 = vld [vmem:[%s5 + $0x8] sm:$0xff]
    %v544 = vld [vmem:[%s5 + $0x10] sm:$0xff]
    %v545 = vld [vmem:[%s5 + $0x18] sm:$0xff]
    %v546 = vld [vmem:[%s5 + $0x20] sm:$0xff]
    %v547 = vld [vmem:[%s5 + $0x28] sm:$0xff]
    %v548 = vld [vmem:[%s5 + $0x30] sm:$0xff]
    %v549 = vld [vmem:[%s5 + $0x38] sm:$0xff]
    %v550 = vld [vmem:[%s5 + $0x40] sm:$0xff]
    %v551 = vld [vmem:[%s5 + $0x48] sm:$0xff]
    %v552 = vld [vmem:[%s5 + $0x50] sm:$0xff]
    %v553 = vld [vmem:[%s5 + $0x58] sm:$0xff]
    %v554 = vld [vmem:[%s5 + $0x60] sm:$0xff]
    %v555 = vld [vmem:[%s5 + $0x68] sm:$0xff]
    %v556 = vld [vmem:[%s5 + $0x70] sm:$0xff]
    %v557 = vld [vmem:[%s5 + $0x78] sm:$0xff]
    %v558 = vld [vmem:[%s6] sm:$0xff]
    %v559 = vld [vmem:[%s6 + $0x8] sm:$0xff]
    %v560 = vld [vmem:[%s6 + $0x10] sm:$0xff]
    %v561 = vld [vmem:[%s6 + $0x18] sm:$0xff]
    %v562 = vld [vmem:[%s6 + $0x20] sm:$0xff]
    %v563 = vld [vmem:[%s6 + $0x28] sm:$0xff]
    %v564 = vld [vmem:[%s6 + $0x30] sm:$0xff]
    %v565 = vld [vmem:[%s6 + $0x38] sm:$0xff]
    %v566 = vld [vmem:[%s6 + $0x40] sm:$0xff]
    %v567 = vld [vmem:[%s6 + $0x48] sm:$0xff]
    %v568 = vld [vmem:[%s6 + $0x50] sm:$0xff]
    %v569 = vld [vmem:[%s6 + $0x58] sm:$0xff]
    %v570 = vld [vmem:[%s6 + $0x60] sm:$0xff]
    %v571 = vld [vmem:[%s6 + $0x68] sm:$0xff]
    %v572 = vld [vmem:[%s6 + $0x70] sm:$0xff]
    %v573 = vld [vmem:[%s6 + $0x78] sm:$0xff]
    %575 = vset.pattern.permute.xlu0 0
    %576 = vperm.xlu0 %575, %v558
    %v577 = vpop.permute.xlu0 %576
    %580 = vset.pattern.permute.xlu0 0
    %581 = vperm.xlu0 %580, %v559
    %v582 = vpop.permute.xlu0 %581
    %585 = vset.pattern.permute.xlu0 0
    %586 = vperm.xlu0 %585, %v560
    %v587 = vpop.permute.xlu0 %586
    %590 = vset.pattern.permute.xlu0 0
    %591 = vperm.xlu0 %590, %v561
    %v592 = vpop.permute.xlu0 %591
    %595 = vset.pattern.permute.xlu0 0
    %596 = vperm.xlu0 %595, %v562
    %v597 = vpop.permute.xlu0 %596
    %600 = vset.pattern.permute.xlu0 0
    %601 = vperm.xlu0 %600, %v563
    %v602 = vpop.permute.xlu0 %601
    %605 = vset.pattern.permute.xlu0 0
    %606 = vperm.xlu0 %605, %v564
    %v607 = vpop.permute.xlu0 %606
    %610 = vset.pattern.permute.xlu0 0
    %611 = vperm.xlu0 %610, %v565
    %v612 = vpop.permute.xlu0 %611
    %615 = vset.pattern.permute.xlu0 0
    %616 = vperm.xlu0 %615, %v566
    %v617 = vpop.permute.xlu0 %616
    %620 = vset.pattern.permute.xlu0 0
    %621 = vperm.xlu0 %620, %v567
    %v622 = vpop.permute.xlu0 %621
    %625 = vset.pattern.permute.xlu0 0
    %626 = vperm.xlu0 %625, %v568
    %v627 = vpop.permute.xlu0 %626
    %630 = vset.pattern.permute.xlu0 0
    %631 = vperm.xlu0 %630, %v569
    %v632 = vpop.permute.xlu0 %631
    %635 = vset.pattern.permute.xlu0 0
    %636 = vperm.xlu0 %635, %v570
    %v637 = vpop.permute.xlu0 %636
    %640 = vset.pattern.permute.xlu0 0
    %641 = vperm.xlu0 %640, %v571
    %v642 = vpop.permute.xlu0 %641
    %645 = vset.pattern.permute.xlu0 0
    %646 = vperm.xlu0 %645, %v572
    %v647 = vpop.permute.xlu0 %646
    %650 = vset.pattern.permute.xlu0 0
    %651 = vperm.xlu0 %650, %v573
    %v652 = vpop.permute.xlu0 %651
    %654 = vmatpush.msra.mxu0 %v541
    %655 = vmatpush.msra.mxu0 %v540
    %656 = vmatpush.msra.mxu0 %v539
    %657 = vmatpush.msra.mxu0 %v538
    %658 = vmatpush.msra.mxu0 %v537
    %659 = vmatpush.msra.mxu0 %v536
    %660 = vmatpush.msra.mxu0 %v535
    %661 = vmatpush.msra.mxu0 %v534
    %662 = vmatpush.msra.mxu0 %v533
    %663 = vmatpush.msra.mxu0 %v532
    %664 = vmatpush.msra.mxu0 %v531
    %665 = vmatpush.msra.mxu0 %v530
    %666 = vmatpush.msra.mxu0 %v529
    %667 = vmatpush.msra.mxu0 %v528
    %668 = vmatpush.msra.mxu0 %v527
    %669 = vmatpush.msra.mxu0 %v526
    %670 = vmatmul.f32.gmra.mxu0 %v542
    %v671 = vpop.f32.mrf.mxu0
    %v672 = vadd.f32 %v577, %v671
    %673 = vmatmul.f32.gmra.mxu0 %v543
    %v674 = vpop.f32.mrf.mxu0
    %v675 = vadd.f32 %v582, %v674
    %676 = vmatmul.f32.gmra.mxu0 %v544
    %v677 = vpop.f32.mrf.mxu0
    %v678 = vadd.f32 %v587, %v677
    %679 = vmatmul.f32.gmra.mxu0 %v545
    %v680 = vpop.f32.mrf.mxu0
    %v681 = vadd.f32 %v592, %v680
    %682 = vmatmul.f32.gmra.mxu0 %v546
    %v683 = vpop.f32.mrf.mxu0
    %v684 = vadd.f32 %v597, %v683
    %685 = vmatmul.f32.gmra.mxu0 %v547
    %v686 = vpop.f32.mrf.mxu0
    %v687 = vadd.f32 %v602, %v686
    %688 = vmatmul.f32.gmra.mxu0 %v548
    %v689 = vpop.f32.mrf.mxu0
    %v690 = vadd.f32 %v607, %v689
    %691 = vmatmul.f32.gmra.mxu0 %v549
    %v692 = vpop.f32.mrf.mxu0
    %v693 = vadd.f32 %v612, %v692
    %694 = vmatmul.f32.gmra.mxu0 %v550
    %v695 = vpop.f32.mrf.mxu0
    %v696 = vadd.f32 %v617, %v695
    %697 = vmatmul.f32.gmra.mxu0 %v551
    %v698 = vpop.f32.mrf.mxu0
    %v699 = vadd.f32 %v622, %v698
    %700 = vmatmul.f32.gmra.mxu0 %v552
    %v701 = vpop.f32.mrf.mxu0
    %v702 = vadd.f32 %v627, %v701
    %703 = vmatmul.f32.gmra.mxu0 %v553
    %v704 = vpop.f32.mrf.mxu0
    %v705 = vadd.f32 %v632, %v704
    %706 = vmatmul.f32.gmra.mxu0 %v554
    %v707 = vpop.f32.mrf.mxu0
    %v708 = vadd.f32 %v637, %v707
    %709 = vmatmul.f32.gmra.mxu0 %v555
    %v710 = vpop.f32.mrf.mxu0
    %v711 = vadd.f32 %v642, %v710
    %712 = vmatmul.f32.gmra.mxu0 %v556
    %v713 = vpop.f32.mrf.mxu0
    %v714 = vadd.f32 %v647, %v713
    %715 = vmatmul.f32.gmra.mxu0 %v557
    %v716 = vpop.f32.mrf.mxu0
    %v717 = vadd.f32 %v652, %v716
    %718 = vdwg.mxu0
    %vm719 = vcmp.ge.f32.partialorder %v672, 0.0
    %vm720 = vcmp.ge.f32.partialorder %v675, 0.0
    %vm721 = vcmp.ge.f32.partialorder %v678, 0.0
    %vm722 = vcmp.ge.f32.partialorder %v681, 0.0
    %vm723 = vcmp.ge.f32.partialorder %v684, 0.0
    %vm724 = vcmp.ge.f32.partialorder %v687, 0.0
    %vm725 = vcmp.ge.f32.partialorder %v690, 0.0
    %vm726 = vcmp.ge.f32.partialorder %v693, 0.0
    %vm727 = vcmp.ge.f32.partialorder %v696, 0.0
    %vm728 = vcmp.ge.f32.partialorder %v699, 0.0
    %vm729 = vcmp.ge.f32.partialorder %v702, 0.0
    %vm730 = vcmp.ge.f32.partialorder %v705, 0.0
    %vm731 = vcmp.ge.f32.partialorder %v708, 0.0
    %vm732 = vcmp.ge.f32.partialorder %v711, 0.0
    %vm733 = vcmp.ge.f32.partialorder %v714, 0.0
    %vm734 = vcmp.ge.f32.partialorder %v717, 0.0
    %v735 = vmul.f32 %v672, 0.5
    %v736 = vmul.f32 %v675, 0.5
    %v737 = vmul.f32 %v678, 0.5
    %v738 = vmul.f32 %v681, 0.5
    %v739 = vmul.f32 %v684, 0.5
    %v740 = vmul.f32 %v687, 0.5
    %v741 = vmul.f32 %v690, 0.5
    %v742 = vmul.f32 %v693, 0.5
    %v743 = vmul.f32 %v696, 0.5
    %v744 = vmul.f32 %v699, 0.5
    %v745 = vmul.f32 %v702, 0.5
    %v746 = vmul.f32 %v705, 0.5
    %v747 = vmul.f32 %v708, 0.5
    %v748 = vmul.f32 %v711, 0.5
    %v749 = vmul.f32 %v714, 0.5
    %v750 = vmul.f32 %v717, 0.5
    %v751 = vsel %vm719, %v672, %v735
    %v752 = vsel %vm720, %v675, %v736
    %v753 = vsel %vm721, %v678, %v737
    %v754 = vsel %vm722, %v681, %v738
    %v755 = vsel %vm723, %v684, %v739
    %v756 = vsel %vm724, %v687, %v740
    %v757 = vsel %vm725, %v690, %v741
    %v758 = vsel %vm726, %v693, %v742
    %v759 = vsel %vm727, %v696, %v743
    %v760 = vsel %vm728, %v699, %v744
    %v761 = vsel %vm729, %v702, %v745
    %v762 = vsel %vm730, %v705, %v746
    %v763 = vsel %vm731, %v708, %v747
    %v764 = vsel %vm732, %v711, %v748
    %v765 = vsel %vm733, %v714, %v749
    %v766 = vsel %vm734, %v717, %v750
    %v767 = vld [vmem:[%s7] sm:$0xff]
    %v768 = vld [vmem:[%s7 + $0x8] sm:$0xff]
    %v769 = vld [vmem:[%s7 + $0x10] sm:$0xff]
    %v770 = vld [vmem:[%s7 + $0x18] sm:$0xff]
    %v771 = vld [vmem:[%s7 + $0x20] sm:$0xff]
    %v772 = vld [vmem:[%s7 + $0x28] sm:$0xff]
    %v773 = vld [vmem:[%s7 + $0x30] sm:$0xff]
    %v774 = vld [vmem:[%s7 + $0x38] sm:$0xff]
    %v775 = vld [vmem:[%s7 + $0x40] sm:$0xff]
    %v776 = vld [vmem:[%s7 + $0x48] sm:$0xff]
    %v777 = vld [vmem:[%s7 + $0x50] sm:$0xff]
    %v778 = vld [vmem:[%s7 + $0x58] sm:$0xff]
    %v779 = vld [vmem:[%s7 + $0x60] sm:$0xff]
    %v780 = vld [vmem:[%s7 + $0x68] sm:$0xff]
    %v781 = vld [vmem:[%s7 + $0x70] sm:$0xff]
    %v782 = vld [vmem:[%s7 + $0x78] sm:$0xff]
    %v783 = vld [vmem:[%s8] sm:$0xff]
    %v784 = vld [vmem:[%s8 + $0x8] sm:$0xff]
    %v785 = vld [vmem:[%s8 + $0x10] sm:$0xff]
    %v786 = vld [vmem:[%s8 + $0x18] sm:$0xff]
    %v787 = vld [vmem:[%s8 + $0x20] sm:$0xff]
    %v788 = vld [vmem:[%s8 + $0x28] sm:$0xff]
    %v789 = vld [vmem:[%s8 + $0x30] sm:$0xff]
    %v790 = vld [vmem:[%s8 + $0x38] sm:$0xff]
    %v791 = vld [vmem:[%s8 + $0x40] sm:$0xff]
    %v792 = vld [vmem:[%s8 + $0x48] sm:$0xff]
    %v793 = vld [vmem:[%s8 + $0x50] sm:$0xff]
    %v794 = vld [vmem:[%s8 + $0x58] sm:$0xff]
    %v795 = vld [vmem:[%s8 + $0x60] sm:$0xff]
    %v796 = vld [vmem:[%s8 + $0x68] sm:$0xff]
    %v797 = vld [vmem:[%s8 + $0x70] sm:$0xff]
    %v798 = vld [vmem:[%s8 + $0x78] sm:$0xff]
    %800 = vset.pattern.permute.xlu0 0
    %801 = vperm.xlu0 %800, %v783
    %v802 = vpop.permute.xlu0 %801
    %805 = vset.pattern.permute.xlu0 0
    %806 = vperm.xlu0 %805, %v784
    %v807 = vpop.permute.xlu0 %806
    %810 = vset.pattern.permute.xlu0 0
    %811 = vperm.xlu0 %810, %v785
    %v812 = vpop.permute.xlu0 %811
    %815 = vset.pattern.permute.xlu0 0
    %816 = vperm.xlu0 %815, %v786
    %v817 = vpop.permute.xlu0 %816
    %820 = vset.pattern.permute.xlu0 0
    %821 = vperm.xlu0 %820, %v787
    %v822 = vpop.permute.xlu0 %821
    %825 = vset.pattern.permute.xlu0 0
    %826 = vperm.xlu0 %825, %v788
    %v827 = vpop.permute.xlu0 %826
    %830 = vset.pattern.permute.xlu0 0
    %831 = vperm.xlu0 %830, %v789
    %v832 = vpop.permute.xlu0 %831
    %835 = vset.pattern.permute.xlu0 0
    %836 = vperm.xlu0 %835, %v790
    %v837 = vpop.permute.xlu0 %836
    %840 = vset.pattern.permute.xlu0 0
    %841 = vperm.xlu0 %840, %v791
    %v842 = vpop.permute.xlu0 %841
    %845 = vset.pattern.permute.xlu0 0
    %846 = vperm.xlu0 %845, %v792
    %v847 = vpop.permute.xlu0 %846
    %850 = vset.pattern.permute.xlu0 0
    %851 = vperm.xlu0 %850, %v793
    %v852 = vpop.permute.xlu0 %851
    %855 = vset.pattern.permute.xlu0 0
    %856 = vperm.xlu0 %855, %v794
    %v857 = vpop.permute.xlu0 %856
    %860 = vset.pattern.permute.xlu0 0
    %861 = vperm.xlu0 %860, %v795
    %v862 = vpop.permute.xlu0 %861
    %865 = vset.pattern.permute.xlu0 0
    %866 = vperm.xlu0 %865, %v796
    %v867 = vpop.permute.xlu0 %866
    %870 = vset.pattern.permute.xlu0 0
    %871 = vperm.xlu0 %870, %v797
    %v872 = vpop.permute.xlu0 %871
    %875 = vset.pattern.permute.xlu0 0
    %876 = vperm.xlu0 %875, %v798
    %v877 = vpop.permute.xlu0 %876
    %879 = vmatpush.msra.mxu0 %v766
    %880 = vmatpush.msra.mxu0 %v765
    %881 = vmatpush.msra.mxu0 %v764
    %882 = vmatpush.msra.mxu0 %v763
    %883 = vmatpush.msra.mxu0 %v762
    %884 = vmatpush.msra.mxu0 %v761
    %885 = vmatpush.msra.mxu0 %v760
    %886 = vmatpush.msra.mxu0 %v759
    %887 = vmatpush.msra.mxu0 %v758
    %888 = vmatpush.msra.mxu0 %v757
    %889 = vmatpush.msra.mxu0 %v756
    %890 = vmatpush.msra.mxu0 %v755
    %891 = vmatpush.msra.mxu0 %v754
    %892 = vmatpush.msra.mxu0 %v753
    %893 = vmatpush.msra.mxu0 %v752
    %894 = vmatpush.msra.mxu0 %v751
    %895 = vmatmul.f32.gmra.mxu0 %v767
    %v896 = vpop.f32.mrf.mxu0
    %v897 = vadd.f32 %v802, %v896
    %898 = vmatmul.f32.gmra.mxu0 %v768
    %v899 = vpop.f32.mrf.mxu0
    %v900 = vadd.f32 %v807, %v899
    %901 = vmatmul.f32.gmra.mxu0 %v769
    %v902 = vpop.f32.mrf.mxu0
    %v903 = vadd.f32 %v812, %v902
    %904 = vmatmul.f32.gmra.mxu0 %v770
    %v905 = vpop.f32.mrf.mxu0
    %v906 = vadd.f32 %v817, %v905
    %907 = vmatmul.f32.gmra.mxu0 %v771
    %v908 = vpop.f32.mrf.mxu0
    %v909 = vadd.f32 %v822, %v908
    %910 = vmatmul.f32.gmra.mxu0 %v772
    %v911 = vpop.f32.mrf.mxu0
    %v912 = vadd.f32 %v827, %v911
    %913 = vmatmul.f32.gmra.mxu0 %v773
    %v914 = vpop.f32.mrf.mxu0
    %v915 = vadd.f32 %v832, %v914
    %916 = vmatmul.f32.gmra.mxu0 %v774
    %v917 = vpop.f32.mrf.mxu0
    %v918 = vadd.f32 %v837, %v917
    %919 = vmatmul.f32.gmra.mxu0 %v775
    %v920 = vpop.f32.mrf.mxu0
    %v921 = vadd.f32 %v842, %v920
    %922 = vmatmul.f32.gmra.mxu0 %v776
    %v923 = vpop.f32.mrf.mxu0
    %v924 = vadd.f32 %v847, %v923
    %925 = vmatmul.f32.gmra.mxu0 %v777
    %v926 = vpop.f32.mrf.mxu0
    %v927 = vadd.f32 %v852, %v926
    %928 = vmatmul.f32.gmra.mxu0 %v778
    %v929 = vpop.f32.mrf.mxu0
    %v930 = vadd.f32 %v857, %v929
    %931 = vmatmul.f32.gmra.mxu0 %v779
    %v932 = vpop.f32.mrf.mxu0
    %v933 = vadd.f32 %v862, %v932
    %934 = vmatmul.f32.gmra.mxu0 %v780
    %v935 = vpop.f32.mrf.mxu0
    %v936 = vadd.f32 %v867, %v935
    %937 = vmatmul.f32.gmra.mxu0 %v781
    %v938 = vpop.f32.mrf.mxu0
    %v939 = vadd.f32 %v872, %v938
    %940 = vmatmul.f32.gmra.mxu0 %v782
    %v941 = vpop.f32.mrf.mxu0
    %v942 = vadd.f32 %v877, %v941
    %943 = vdwg.mxu0
    %vm944 = vcmp.ge.f32.partialorder %v897, 0.0
    %vm945 = vcmp.ge.f32.partialorder %v900, 0.0
    %vm946 = vcmp.ge.f32.partialorder %v903, 0.0
    %vm947 = vcmp.ge.f32.partialorder %v906, 0.0
    %vm948 = vcmp.ge.f32.partialorder %v909, 0.0
    %vm949 = vcmp.ge.f32.partialorder %v912, 0.0
    %vm950 = vcmp.ge.f32.partialorder %v915, 0.0
    %vm951 = vcmp.ge.f32.partialorder %v918, 0.0
    %vm952 = vcmp.ge.f32.partialorder %v921, 0.0
    %vm953 = vcmp.ge.f32.partialorder %v924, 0.0
    %vm954 = vcmp.ge.f32.partialorder %v927, 0.0
    %vm955 = vcmp.ge.f32.partialorder %v930, 0.0
    %vm956 = vcmp.ge.f32.partialorder %v933, 0.0
    %vm957 = vcmp.ge.f32.partialorder %v936, 0.0
    %vm958 = vcmp.ge.f32.partialorder %v939, 0.0
    %vm959 = vcmp.ge.f32.partialorder %v942, 0.0
    %v960 = vmul.f32 %v897, 0.5
    %v961 = vmul.f32 %v900, 0.5
    %v962 = vmul.f32 %v903, 0.5
    %v963 = vmul.f32 %v906, 0.5
    %v964 = vmul.f32 %v909, 0.5
    %v965 = vmul.f32 %v912, 0.5
    %v966 = vmul.f32 %v915, 0.5
    %v967 = vmul.f32 %v918, 0.5
    %v968 = vmul.f32 %v921, 0.5
    %v969 = vmul.f32 %v924, 0.5
    %v970 = vmul.f32 %v927, 0.5
    %v971 = vmul.f32 %v930, 0.5
    %v972 = vmul.f32 %v933, 0.5
    %v973 = vmul.f32 %v936, 0.5
    %v974 = vmul.f32 %v939, 0.5
    %v975 = vmul.f32 %v942, 0.5
    %v976 = vsel %vm944, %v897, %v960
    %v977 = vsel %vm945, %v900, %v961
    %v978 = vsel %vm946, %v903, %v962
    %v979 = vsel %vm947, %v906, %v963
    %v980 = vsel %vm948, %v909, %v964
    %v981 = vsel %vm949, %v912, %v965
    %v982 = vsel %vm950, %v915, %v966
    %v983 = vsel %vm951, %v918, %v967
    %v984 = vsel %vm952, %v921, %v968
    %v985 = vsel %vm953, %v924, %v969
    %v986 = vsel %vm954, %v927, %v970
    %v987 = vsel %vm955, %v930, %v971
    %v988 = vsel %vm956, %v933, %v972
    %v989 = vsel %vm957, %v936, %v973
    %v990 = vsel %vm958, %v939, %v974
    %v991 = vsel %vm959, %v942, %v975
    %v992 = vld [vmem:[%s9] sm:$0xff]
    %v993 = vld [vmem:[%s9 + $0x8] sm:$0xff]
    %v994 = vld [vmem:[%s9 + $0x10] sm:$0xff]
    %v995 = vld [vmem:[%s9 + $0x18] sm:$0xff]
    %v996 = vld [vmem:[%s9 + $0x20] sm:$0xff]
    %v997 = vld [vmem:[%s9 + $0x28] sm:$0xff]
    %v998 = vld [vmem:[%s9 + $0x30] sm:$0xff]
    %v999 = vld [vmem:[%s9 + $0x38] sm:$0xff]
    %v1000 = vld [vmem:[%s9 + $0x40] sm:$0xff]
    %v1001 = vld [vmem:[%s9 + $0x48] sm:$0xff]
    %v1002 = vld [vmem:[%s9 + $0x50] sm:$0xff]
    %v1003 = vld [vmem:[%s9 + $0x58] sm:$0xff]
    %v1004 = vld [vmem:[%s9 + $0x60] sm:$0xff]
    %v1005 = vld [vmem:[%s9 + $0x68] sm:$0xff]
    %v1006 = vld [vmem:[%s9 + $0x70] sm:$0xff]
    %v1007 = vld [vmem:[%s9 + $0x78] sm:$0xff]
    %1009 = vset.pattern.permute.xlu0 0
    %1010 = vperm.xlu0 %1009, %v992
    %v1011 = vpop.permute.xlu0 %1010
    %1014 = vset.pattern.permute.xlu0 0
    %1015 = vperm.xlu0 %1014, %v993
    %v1016 = vpop.permute.xlu0 %1015
    %1019 = vset.pattern.permute.xlu0 0
    %1020 = vperm.xlu0 %1019, %v994
    %v1021 = vpop.permute.xlu0 %1020
    %1024 = vset.pattern.permute.xlu0 0
    %1025 = vperm.xlu0 %1024, %v995
    %v1026 = vpop.permute.xlu0 %1025
    %1029 = vset.pattern.permute.xlu0 0
    %1030 = vperm.xlu0 %1029, %v996
    %v1031 = vpop.permute.xlu0 %1030
    %1034 = vset.pattern.permute.xlu0 0
    %1035 = vperm.xlu0 %1034, %v997
    %v1036 = vpop.permute.xlu0 %1035
    %1039 = vset.pattern.permute.xlu0 0
    %1040 = vperm.xlu0 %1039, %v998
    %v1041 = vpop.permute.xlu0 %1040
    %1044 = vset.pattern.permute.xlu0 0
    %1045 = vperm.xlu0 %1044, %v999
    %v1046 = vpop.permute.xlu0 %1045
    %1049 = vset.pattern.permute.xlu0 0
    %1050 = vperm.xlu0 %1049, %v1000
    %v1051 = vpop.permute.xlu0 %1050
    %1054 = vset.pattern.permute.xlu0 0
    %1055 = vperm.xlu0 %1054, %v1001
    %v1056 = vpop.permute.xlu0 %1055
    %1059 = vset.pattern.permute.xlu0 0
    %1060 = vperm.xlu0 %1059, %v1002
    %v1061 = vpop.permute.xlu0 %1060
    %1064 = vset.pattern.permute.xlu0 0
    %1065 = vperm.xlu0 %1064, %v1003
    %v1066 = vpop.permute.xlu0 %1065
    %1069 = vset.pattern.permute.xlu0 0
    %1070 = vperm.xlu0 %1069, %v1004
    %v1071 = vpop.permute.xlu0 %1070
    %1074 = vset.pattern.permute.xlu0 0
    %1075 = vperm.xlu0 %1074, %v1005
    %v1076 = vpop.permute.xlu0 %1075
    %1079 = vset.pattern.permute.xlu0 0
    %1080 = vperm.xlu0 %1079, %v1006
    %v1081 = vpop.permute.xlu0 %1080
    %1084 = vset.pattern.permute.xlu0 0
    %1085 = vperm.xlu0 %1084, %v1007
    %v1086 = vpop.permute.xlu0 %1085
    %v1088 = vmul.f32 %v1011, %v976
    %v1089 = vmul.f32 %v1016, %v977
    %v1090 = vmul.f32 %v1021, %v978
    %v1091 = vmul.f32 %v1026, %v979
    %v1092 = vmul.f32 %v1031, %v980
    %v1093 = vmul.f32 %v1036, %v981
    %v1094 = vmul.f32 %v1041, %v982
    %v1095 = vmul.f32 %v1046, %v983
    %v1096 = vmul.f32 %v1051, %v984
    %v1097 = vmul.f32 %v1056, %v985
    %v1098 = vmul.f32 %v1061, %v986
    %v1099 = vmul.f32 %v1066, %v987
    %v1100 = vmul.f32 %v1071, %v988
    %v1101 = vmul.f32 %v1076, %v989
    %v1102 = vmul.f32 %v1081, %v990
    %v1103 = vmul.f32 %v1086, %v991
    %v1104 = vadd.f32 %v1088, %v1089
    %v1105 = vadd.f32 %v1104, %v1090
    %v1106 = vadd.f32 %v1105, %v1091
    %v1107 = vadd.f32 %v1106, %v1092
    %v1108 = vadd.f32 %v1107, %v1093
    %v1109 = vadd.f32 %v1108, %v1094
    %v1110 = vadd.f32 %v1109, %v1095
    %v1111 = vadd.f32 %v1110, %v1096
    %v1112 = vadd.f32 %v1111, %v1097
    %v1113 = vadd.f32 %v1112, %v1098
    %v1114 = vadd.f32 %v1113, %v1099
    %v1115 = vadd.f32 %v1114, %v1100
    %v1116 = vadd.f32 %v1115, %v1101
    %v1117 = vadd.f32 %v1116, %v1102
    %v1118 = vadd.f32 %v1117, %v1103
    %v1119 = vrot.slane %v1118, 4
    %v1120 = vadd.f32 %v1118, %v1119
    %v1121 = vrot.slane %v1120, 2
    %v1122 = vadd.f32 %v1120, %v1121
    %v1123 = vrot.slane %v1122, 1
    %v1124 = vadd.f32 %v1122, %v1123
    %v1125 = vld [vmem:[#allocation2] sm:$0x1]
    %1127 = vset.pattern.permute.xlu0 0
    %1128 = vperm.xlu0 %1127, %v1125
    %v1129 = vpop.permute.xlu0 %1128
    %v1131 = vperm.slane %v1129, 0
    %v1132 = vadd.f32 %v1124, %v1131
    %1133 = vst [vmem:[#allocation3] sm:$0x1] %v1132
    // Predicated region
    $region46: #{tpu_custom_call.1} parent=1 // pred_check
      _
    $region47: #{tpu_custom_call.1} parent=1 // pred_check_branch
      %1135 = sbr.rel (0) target = $region49
    $region48: #{tpu_custom_call.1} parent=1 // pred_region
      %1137 = vsyncadd [#allocation4], 0
      %s1139 = sshll.u32 [#allocation3], 4
      %s1140 = int_to_ptr.vmem [resolvable:$true] %s1139
      %s1141 = sshll.u32 %s11, 4
      %s1142 = int_to_ptr.hbm [resolvable:$true] %s1141
      %1144 = dma.vmem_to_hbm [thread:$0]  %s1140, 16, %s1142, [#allocation4]
    $region49: #{tpu_custom_call.1} parent=1 // pred_fallthru
      _
    // Predicated region
    $region50: #{tpu_custom_call.1} parent=1 // pred_check
      _
    $region51: #{tpu_custom_call.1} parent=1 // pred_check_branch
      %1146 = sbr.rel (0) target = $region53
    $region52: #{tpu_custom_call.1} parent=1 // pred_region
      %1148 = dma.done [#allocation4], 16
    $region53: #{tpu_custom_call.1} parent=1 // pred_fallthru
      _
    %1149 = vsyncpa [#allocation4], 1

</llo_original>
